<compile_context>
chip_gen: v7x
topology: tpu7x:2x2x1
jax: 0.10.0
libtpu: 0.0.40
codegen_flags: <defaults>
</compile_context>

<pallas_src>
import functools

import jax
import jax.numpy as jnp
from jax.experimental import pallas as pl
from jax.experimental.pallas import tpu as pltpu

_NEG_BIG = -1e30  # finite "-inf": masked lanes never produce inf - inf = NaN


def _bahdanau_kernel(q_ref, k_ref, wq_ref, wm_ref, wa_ref,
                     ctx_ref, score_ref, m_sc, l_sc, acc_sc,
                     *, seq_len, needs_mask):
    # q_ref:     (BB, Q)        query block (compute dtype)
    # k_ref:     (BB, ST, M)    keys tile (compute dtype)
    # wq_ref:    (Q, U_pad)     query_layer weight, [in, out], zero-padded
    # wm_ref:    (M, U_pad)     memory_layer weight, [in, out], zero-padded
    # wa_ref:    (1, U_pad)     alignment_layer weight row, zero-padded (f32)
    # ctx_ref:   (BB, M)        total_context output block (f32)
    # score_ref: (BB, ST)       alignment_score output tile (f32)
    # m_sc/l_sc: (BB, 1)        online-softmax running max / denominator
    # acc_sc:    (BB, M)        running (unnormalized) context accumulator
    BB, ST, M = k_ref.shape
    U = wq_ref.shape[1]
    s_idx = pl.program_id(1)

    @pl.when(s_idx == 0)
    def _init():
        m_sc[...] = jnp.full_like(m_sc, _NEG_BIG)
        l_sc[...] = jnp.zeros_like(l_sc)
        acc_sc[...] = jnp.zeros_like(acc_sc)

    q = q_ref[...]                                       # (BB, Q)
    keys = k_ref[...]                                    # (BB, ST, M)

    # processed_query = query @ Wq                       -> (BB, U) f32
    pq = jnp.dot(q, wq_ref[...], preferred_element_type=jnp.float32)

    # values = keys @ Wm.  ST % sublane == 0, so this reshape is a pure view.
    vals = jnp.dot(
        keys.reshape(BB * ST, M), wm_ref[...],
        preferred_element_type=jnp.float32,
    ).reshape(BB, ST, U)                                 # (BB, ST, U) f32

    # alignment score: tanh(pq + vals) . wa  (VPU mul + XLU lane reduce;
    # padded U lanes are exact zeros so they contribute 0)
    t = jnp.tanh(vals + pq[:, None, :])                  # (BB, ST, U) f32
    score = jnp.sum(t * wa_ref[...], axis=-1)            # (BB, ST) f32

    if needs_mask:
        pos = s_idx * ST + jax.lax.broadcasted_iota(jnp.int32, (BB, ST), 1)
        score = jnp.where(pos < seq_len, score, _NEG_BIG)

    score_ref[...] = score.astype(score_ref.dtype)

    # ---- flash-style online softmax + MXU context accumulation ----
    m_prev = m_sc[...]                                   # (BB, 1)
    m_new = jnp.maximum(m_prev, jnp.max(score, axis=-1, keepdims=True))
    alpha = jnp.exp(m_prev - m_new)                      # (BB, 1)
    p = jnp.exp(score - m_new)                           # (BB, ST)
    l_sc[...] = alpha * l_sc[...] + jnp.sum(p, axis=-1, keepdims=True)

    # context contribution on the MXU: einsum('bqk,bkd->bqd') with q == 1
    ctx_t = jnp.einsum(
        "bqk,bkd->bqd", p[:, None, :].astype(keys.dtype), keys,
        preferred_element_type=jnp.float32,
    )[:, 0, :]                                           # (BB, M) f32
    acc_sc[...] = alpha * acc_sc[...] + ctx_t
    m_sc[...] = m_new

    @pl.when(s_idx == pl.num_programs(1) - 1)
    def _finalize():
        denom = l_sc[...]
        r = pl.reciprocal(denom, approx=True)            # EUP slot
        r = r * (2.0 - denom * r)                        # one Newton step
        ctx_ref[...] = (acc_sc[...] * r).astype(ctx_ref.dtype)


def _round_up(x, m):
    return ((x + m - 1) // m) * m


def _choose_blocks(B, S, M, Q, U_pad, compute_bytes):
    """Pick (batch_block, seq_tile) from the chip's real VMEM capacity,
    counting double-buffered keys/query/outputs + f32 projection temps."""
    try:
        vmem_cap = int(pltpu.get_tpu_info().vmem_capacity_bytes)
        if vmem_cap <= 0:
            raise ValueError
    except Exception:
        vmem_cap = 64 * 1024 * 1024          # conservative (v7x per-TC) fallback
    budget = vmem_cap // 2                   # headroom for Mosaic internals

    def footprint(bb, st):
        keys_blk = bb * st * M * compute_bytes
        q_blk = bb * Q * compute_bytes
        w_bytes = (Q + M + 1) * U_pad * compute_bytes + U_pad * 4
        proj_tmp = 2 * bb * st * U_pad * 4   # vals + tanh temporaries (f32)
        score_blk = bb * st * 4
        ctx_blk = bb * M * 4
        scratch = bb * (M + 8) * 4
        return (2 * (keys_blk + q_blk + score_blk + ctx_blk)   # double-buffered
                + w_bytes + proj_tmp + scratch)

    # Largest batch block that fits (on 1-TC chips extra grid steps only add
    # ~0.35us overhead each, so prefer one big block); multiples of 8 below B.
    bb = B
    while bb > 8 and footprint(bb, S) > budget:
        bb = max(8, ((bb // 2) // 8) * 8)

    st = S
    if footprint(bb, st) > budget:
        # Tile the sequence axis; the in-kernel online softmax bounds VMEM.
        st = 128
        while 2 * st <= S and footprint(bb, 2 * st) <= budget:
            st *= 2
        st = min(st, S)
    return bb, st, vmem_cap


def bahdanau_attention(query, keys, w_query, w_memory, w_align, *,
                       compute_dtype=None, batch_block=None, seq_block=None):
    """query: (B, Q), keys: (B, S, M); weights in PyTorch [out, in] layout.

    Returns (total_context (B, M) f32, alignment_score (B, S) f32, pre-softmax
    as in the reference module).  Pass compute_dtype=jnp.bfloat16 to stream
    keys / weights as bf16 (f32 MXU accumulation) on HBM-bound shapes."""
    B, Q = query.shape
    _, S, M = keys.shape
    U = w_query.shape[0]

    cdt = jnp.dtype(compute_dtype) if compute_dtype is not None else jnp.dtype(keys.dtype)
    itemsize = cdt.itemsize
    sublane = 8 if itemsize >= 4 else (16 if itemsize == 2 else 32)
    U_pad = _round_up(U, 128)                # lane-aligned MXU columns (zeros)

    BB, ST, vmem_cap = _choose_blocks(B, S, M, Q, U_pad, itemsize)
    if batch_block is not None:
        BB = min(B, batch_block)
        if BB < B:
            BB = min(B, max(8, (BB // 8) * 8))
    if seq_block is not None:
        ST = min(seq_block, S)

    # Sequence tile: sublane-aligned so the in-kernel (BB*ST, M) reshape of the
    # keys block is a pure view; lane-aligned (128) when actually tiling so the
    # score output tiles are unmasked dense stores.
    if ST >= S:
        ST = _round_up(S, sublane)
    else:
        ST = _round_up(ST, 128)
        if ST >= S:
            ST = _round_up(S, sublane)
    S_pad = _round_up(S, ST)
    needs_mask = (S_pad != S)

    # Weight prep (one-time layout plumbing): [out, in] -> [in, out], zero-pad
    # U, cast the MXU operands to the compute dtype.  wa stays f32 (tiny).
    wq_t = jnp.asarray(w_query, jnp.float32).T           # (Q, U)
    wm_t = jnp.asarray(w_memory, jnp.float32).T          # (M, U)
    wa = jnp.asarray(w_align, jnp.float32)               # (1, U)
    if U_pad != U:
        wq_t = jnp.pad(wq_t, ((0, 0), (0, U_pad - U)))
        wm_t = jnp.pad(wm_t, ((0, 0), (0, U_pad - U)))
        wa = jnp.pad(wa, ((0, 0), (0, U_pad - U)))
    wq_t = wq_t.astype(cdt)
    wm_t = wm_t.astype(cdt)

    q_in = jnp.asarray(query).astype(cdt)
    k_in = jnp.asarray(keys).astype(cdt)
    if S_pad != S:
        k_in = jnp.pad(k_in, ((0, 0), (0, S_pad - S), (0, 0)))  # zero keys

    grid = (pl.cdiv(B, BB), S_pad // ST)
    kernel = functools.partial(_bahdanau_kernel, seq_len=S, needs_mask=needs_mask)

    # NOTE: when B % BB != 0, the padded rows of the last batch block may see
    # uninitialized VMEM (possible transient Inf/NaN); their outputs are masked
    # on writeback, so results are correct.
    ctx, score = pl.pallas_call(
        kernel,
        out_shape=(
            jax.ShapeDtypeStruct((B, M), jnp.float32),
            jax.ShapeDtypeStruct((B, S_pad), jnp.float32),
        ),
        grid_spec=pltpu.PrefetchScalarGridSpec(
            num_scalar_prefetch=0,
            grid=grid,
            in_specs=[
                pl.BlockSpec((BB, Q), lambda b, s: (b, 0)),
                pl.BlockSpec((BB, ST, M), lambda b, s: (b, s, 0)),
                pl.BlockSpec((Q, U_pad), lambda b, s: (0, 0)),
                pl.BlockSpec((M, U_pad), lambda b, s: (0, 0)),
                pl.BlockSpec((1, U_pad), lambda b, s: (0, 0)),
            ],
            out_specs=[
                pl.BlockSpec((BB, M), lambda b, s: (b, 0)),
                pl.BlockSpec((BB, ST), lambda b, s: (b, s)),
            ],
            scratch_shapes=[
                pltpu.VMEM((BB, 1), jnp.float32),   # running max m
                pltpu.VMEM((BB, 1), jnp.float32),   # running denominator l
                pltpu.VMEM((BB, M), jnp.float32),   # running context acc
            ],
        ),
        compiler_params=pltpu.CompilerParams(
            dimension_semantics=("parallel", "arbitrary"),
            vmem_limit_bytes=int(vmem_cap * 3 // 4),
        ),
    )(q_in, k_in, wq_t, wm_t, wa)

    if S_pad != S:
        score = score[:, :S]
    return ctx, score


def bahdanau_reference(query, keys, w_query, w_memory, w_align):
    pq = query @ w_query.T                             # (B, U)
    vals = jnp.einsum("bsm,um->bsu", keys, w_memory)   # (B, S, U)
    t = jnp.tanh(pq[:, None, :] + vals)                # (B, S, U)
    score = jnp.einsum("bsu,u->bs", t, w_align[0])     # (B, S)
    w = jax.nn.softmax(score, axis=-1)                 # (B, S)
    ctx = jnp.einsum("bs,bsm->bm", w, keys)            # (B, M)
    return ctx, score


if __name__ == "__main__":
    B, S = 2, 8
    query_size, memory_size, num_units = 32, 32, 32

    key = jax.random.PRNGKey(0)
    k0, k1, k2, k3, k4, k5 = jax.random.split(key, 6)

    query = jax.random.normal(k0, (B, query_size), dtype=jnp.float32)
    keys = jax.random.normal(k1, (B, S, memory_size), dtype=jnp.float32)

    # nn.Linear(in, out, bias=False)-style weights [out_features, in_features].
    def linear_init(k, out_f, in_f):
        bound = 1.0 / jnp.sqrt(jnp.float32(in_f))
        return jax.random.uniform(k, (out_f, in_f), jnp.float32, -bound, bound)

    w_query = linear_init(k2, num_units, query_size)
    w_memory = linear_init(k3, num_units, memory_size)
    w_align = linear_init(k4, 1, num_units)

    ctx_ref, score_ref = bahdanau_reference(query, keys, w_query, w_memory, w_align)

    # 1) f32 compute path (matches the PyTorch module numerics).
    ctx, score = bahdanau_attention(query, keys, w_query, w_memory, w_align)
    jax.block_until_ready((ctx, score))
    assert jnp.allclose(ctx, ctx_ref, atol=2e-4, rtol=2e-4)
    assert jnp.allclose(score, score_ref, atol=2e-4, rtol=2e-4)

    # 2) bf16-streamed keys/weights (f32 accumulation) -- the HBM-bound fast path.
    ctx_b, score_b = bahdanau_attention(query, keys, w_query, w_memory, w_align,
                                        compute_dtype=jnp.bfloat16)
    jax.block_until_ready((ctx_b, score_b))
    assert jnp.allclose(ctx_b, ctx_ref, atol=1e-1, rtol=1e-1)
    assert jnp.allclose(score_b, score_ref, atol=1e-1, rtol=1e-1)

    # 3) Sequence-tiled flash-softmax path (ragged S -> in-kernel masking).
    B2, S2, M2 = 4, 320, 64
    query2 = jax.random.normal(k5, (B2, query_size), dtype=jnp.float32)
    keys2 = jax.random.normal(k0, (B2, S2, M2), dtype=jnp.float32)
    w_memory2 = linear_init(k3, num_units, M2)
    ctx2_ref, score2_ref = bahdanau_reference(query2, keys2, w_query, w_memory2, w_align)
    ctx2, score2 = bahdanau_attention(query2, keys2, w_query, w_memory2, w_align,
                                      seq_block=128)
    jax.block_until_ready((ctx2, score2))
    assert jnp.allclose(ctx2, ctx2_ref, atol=5e-3, rtol=5e-3)
    assert jnp.allclose(score2, score2_ref, atol=5e-3, rtol=5e-3)

    print("KERNEL_OK")
</pallas_src>

<mosaic_0001>
module attributes {stable_mosaic.version = 11 : i64} {
  func.func @_bahdanau_kernel(%arg0: i32, %arg1: i32, %arg2: memref<2x32xf32, #tpu.memory_space<vmem>>, %arg3: memref<2x8x32xf32, #tpu.memory_space<vmem>>, %arg4: memref<32x128xf32, #tpu.memory_space<vmem>>, %arg5: memref<32x128xf32, #tpu.memory_space<vmem>>, %arg6: memref<1x128xf32, #tpu.memory_space<vmem>>, %arg7: memref<2x32xf32, #tpu.memory_space<vmem>>, %arg8: memref<2x8xf32, #tpu.memory_space<vmem>>, %arg9: memref<2x1xf32, #tpu.memory_space<vmem>>, %arg10: memref<2x1xf32, #tpu.memory_space<vmem>>, %arg11: memref<2x32xf32, #tpu.memory_space<vmem>>) attributes {dimension_semantics = [#tpu.dimension_semantics<parallel>, #tpu.dimension_semantics<arbitrary>], iteration_bounds = array<i64: 1, 1>, scalar_prefetch = 0 : i64, scratch_operands = 3 : i64, tpu.core_type = #tpu.core_type<tc>, window_params = [{transform_indices = @transform_0, window_bounds = array<i64: 2, 32>}, {transform_indices = @transform_1, window_bounds = array<i64: 2, 8, 32>}, {pipeline_mode = #tpu.pipeline_mode<synchronous>, transform_indices = @transform_2, window_bounds = array<i64: 32, 128>}, {pipeline_mode = #tpu.pipeline_mode<synchronous>, transform_indices = @transform_3, window_bounds = array<i64: 32, 128>}, {pipeline_mode = #tpu.pipeline_mode<synchronous>, transform_indices = @transform_4, window_bounds = array<i64: 1, 128>}, {transform_indices = @transform_5, window_bounds = array<i64: 2, 32>}, {transform_indices = @transform_6, window_bounds = array<i64: 2, 8>}]} {
    %c0_i32 = arith.constant 0 : i32
    %0 = arith.cmpi eq, %arg1, %c0_i32 : i32
    %1 = arith.extui %0 : i1 to i32
    %c0_i32_0 = arith.constant 0 : i32
    %2 = arith.cmpi ne, %1, %c0_i32_0 : i32
    scf.if %2 {
      %cst_32 = arith.constant -1.000000e+30 : f32
      %48 = vector.broadcast %cst_32 : f32 to vector<2x1xf32>
      %c0_33 = arith.constant 0 : index
      %c0_34 = arith.constant 0 : index
      %49 = vector.load %arg9[%c0_33, %c0_34] : memref<2x1xf32, #tpu.memory_space<vmem>>, vector<2x1xf32>
      tpu.vector_store %arg9[%c0_33, %c0_34], %48 {strides = array<i32>} : memref<2x1xf32, #tpu.memory_space<vmem>>, vector<2x1xf32>,
      %cst_35 = arith.constant 0.000000e+00 : f32
      %50 = vector.broadcast %cst_35 : f32 to vector<2x1xf32>
      %c0_36 = arith.constant 0 : index
      %c0_37 = arith.constant 0 : index
      %51 = vector.load %arg10[%c0_36, %c0_37] : memref<2x1xf32, #tpu.memory_space<vmem>>, vector<2x1xf32>
      tpu.vector_store %arg10[%c0_36, %c0_37], %50 {strides = array<i32>} : memref<2x1xf32, #tpu.memory_space<vmem>>, vector<2x1xf32>,
      %cst_38 = arith.constant 0.000000e+00 : f32
      %52 = vector.broadcast %cst_38 : f32 to vector<2x32xf32>
      %c0_39 = arith.constant 0 : index
      %c0_40 = arith.constant 0 : index
      %53 = vector.load %arg11[%c0_39, %c0_40] : memref<2x32xf32, #tpu.memory_space<vmem>>, vector<2x32xf32>
      tpu.vector_store %arg11[%c0_39, %c0_40], %52 {strides = array<i32>} : memref<2x32xf32, #tpu.memory_space<vmem>>, vector<2x32xf32>,
    } else {
    }
    %c0 = arith.constant 0 : index
    %c0_1 = arith.constant 0 : index
    %3 = vector.load %arg2[%c0, %c0_1] : memref<2x32xf32, #tpu.memory_space<vmem>>, vector<2x32xf32>
    %c0_2 = arith.constant 0 : index
    %c0_3 = arith.constant 0 : index
    %c0_4 = arith.constant 0 : index
    %4 = vector.load %arg3[%c0_2, %c0_3, %c0_4] : memref<2x8x32xf32, #tpu.memory_space<vmem>>, vector<2x8x32xf32>
    %c0_5 = arith.constant 0 : index
    %c0_6 = arith.constant 0 : index
    %5 = vector.load %arg4[%c0_5, %c0_6] : memref<32x128xf32, #tpu.memory_space<vmem>>, vector<32x128xf32>
    %cst = arith.constant dense<0.000000e+00> : vector<2x128xf32>
    %6 = tpu.matmul %3, %5, %cst {dimension_numbers = #tpu.dot_dimension_numbers<[1], [0], [0], [1], [0, 0, 1, 1], [], []>} : vector<2x32xf32>, vector<32x128xf32>, vector<2x128xf32> -> vector<2x128xf32>
    %7 = vector.shape_cast %4 : vector<2x8x32xf32> to vector<16x32xf32>
    %c0_7 = arith.constant 0 : index
    %c0_8 = arith.constant 0 : index
    %8 = vector.load %arg5[%c0_7, %c0_8] : memref<32x128xf32, #tpu.memory_space<vmem>>, vector<32x128xf32>
    %cst_9 = arith.constant dense<0.000000e+00> : vector<16x128xf32>
    %9 = tpu.matmul %7, %8, %cst_9 {dimension_numbers = #tpu.dot_dimension_numbers<[1], [0], [0], [1], [0, 0, 1, 1], [], []>} : vector<16x32xf32>, vector<32x128xf32>, vector<16x128xf32> -> vector<16x128xf32>
    %10 = vector.shape_cast %9 : vector<16x128xf32> to vector<2x8x128xf32>
    %11 = vector.shape_cast %6 : vector<2x128xf32> to vector<2x1x128xf32>
    %12 = vector.broadcast %11 : vector<2x1x128xf32> to vector<2x8x128xf32>
    %13 = arith.addf %10, %12 : vector<2x8x128xf32>
    %14 = math.tanh %13 : vector<2x8x128xf32>
    %c0_10 = arith.constant 0 : index
    %c0_11 = arith.constant 0 : index
    %15 = vector.load %arg6[%c0_10, %c0_11] : memref<1x128xf32, #tpu.memory_space<vmem>>, vector<1x128xf32>
    %16 = vector.shape_cast %15 : vector<1x128xf32> to vector<1x1x128xf32>
    %17 = vector.broadcast %16 : vector<1x1x128xf32> to vector<2x8x128xf32>
    %18 = arith.mulf %14, %17 : vector<2x8x128xf32>
    %cst_12 = arith.constant dense<0.000000e+00> : vector<2x8xf32>
    %19 = vector.multi_reduction <add>, %18, %cst_12 [2] : vector<2x8x128xf32> to vector<2x8xf32>
    %c0_13 = arith.constant 0 : index
    %c0_14 = arith.constant 0 : index
    %20 = vector.load %arg8[%c0_13, %c0_14] : memref<2x8xf32, #tpu.memory_space<vmem>>, vector<2x8xf32>
    tpu.vector_store %arg8[%c0_13, %c0_14], %19 {strides = array<i32>} : memref<2x8xf32, #tpu.memory_space<vmem>>, vector<2x8xf32>,
    %c0_15 = arith.constant 0 : index
    %c0_16 = arith.constant 0 : index
    %21 = vector.load %arg9[%c0_15, %c0_16] : memref<2x1xf32, #tpu.memory_space<vmem>>, vector<2x1xf32>
    %cst_17 = arith.constant dense<0xFF800000> : vector<2xf32>
    %22 = vector.multi_reduction <maximumf>, %19, %cst_17 [1] : vector<2x8xf32> to vector<2xf32>
    %23 = vector.shape_cast %22 : vector<2xf32> to vector<2x1xf32>
    %24 = arith.maximumf %21, %23 : vector<2x1xf32>
    %25 = arith.subf %21, %24 : vector<2x1xf32>
    %26 = math.exp %25 : vector<2x1xf32>
    %27 = vector.broadcast %24 : vector<2x1xf32> to vector<2x8xf32>
    %28 = arith.subf %19, %27 : vector<2x8xf32>
    %29 = math.exp %28 : vector<2x8xf32>
    %c0_18 = arith.constant 0 : index
    %c0_19 = arith.constant 0 : index
    %30 = vector.load %arg10[%c0_18, %c0_19] : memref<2x1xf32, #tpu.memory_space<vmem>>, vector<2x1xf32>
    %31 = arith.mulf %26, %30 : vector<2x1xf32>
    %cst_20 = arith.constant dense<0.000000e+00> : vector<2xf32>
    %32 = vector.multi_reduction <add>, %29, %cst_20 [1] : vector<2x8xf32> to vector<2xf32>
    %33 = vector.shape_cast %32 : vector<2xf32> to vector<2x1xf32>
    %34 = arith.addf %31, %33 : vector<2x1xf32>
    %c0_21 = arith.constant 0 : index
    %c0_22 = arith.constant 0 : index
    %35 = vector.load %arg10[%c0_21, %c0_22] : memref<2x1xf32, #tpu.memory_space<vmem>>, vector<2x1xf32>
    tpu.vector_store %arg10[%c0_21, %c0_22], %34 {strides = array<i32>} : memref<2x1xf32, #tpu.memory_space<vmem>>, vector<2x1xf32>,
    %36 = vector.shape_cast %29 : vector<2x8xf32> to vector<2x1x8xf32>
    "tpu.trace_start"() <{level = 10 : i32, message = "bqk,bkd->bqd"}> : () -> ()
    %cst_23 = arith.constant dense<0.000000e+00> : vector<2x1x32xf32>
    %37 = tpu.matmul %36, %4, %cst_23 {dimension_numbers = #tpu.dot_dimension_numbers<[2], [1], [1], [2], [0, 0, 0, 1, 1, 2], [0], [0]>} : vector<2x1x8xf32>, vector<2x8x32xf32>, vector<2x1x32xf32> -> vector<2x1x32xf32>
    "tpu.trace_stop"() : () -> ()
    %38 = vector.shape_cast %37 : vector<2x1x32xf32> to vector<2x32xf32>
    %c0_24 = arith.constant 0 : index
    %c0_25 = arith.constant 0 : index
    %39 = vector.load %arg11[%c0_24, %c0_25] : memref<2x32xf32, #tpu.memory_space<vmem>>, vector<2x32xf32>
    %40 = vector.broadcast %26 : vector<2x1xf32> to vector<2x32xf32>
    %41 = arith.mulf %40, %39 : vector<2x32xf32>
    %42 = arith.addf %41, %38 : vector<2x32xf32>
    %c0_26 = arith.constant 0 : index
    %c0_27 = arith.constant 0 : index
    %43 = vector.load %arg11[%c0_26, %c0_27] : memref<2x32xf32, #tpu.memory_space<vmem>>, vector<2x32xf32>
    tpu.vector_store %arg11[%c0_26, %c0_27], %42 {strides = array<i32>} : memref<2x32xf32, #tpu.memory_space<vmem>>, vector<2x32xf32>,
    %c0_28 = arith.constant 0 : index
    %c0_29 = arith.constant 0 : index
    %44 = vector.load %arg9[%c0_28, %c0_29] : memref<2x1xf32, #tpu.memory_space<vmem>>, vector<2x1xf32>
    tpu.vector_store %arg9[%c0_28, %c0_29], %24 {strides = array<i32>} : memref<2x1xf32, #tpu.memory_space<vmem>>, vector<2x1xf32>,
    %c0_i32_30 = arith.constant 0 : i32
    %45 = arith.cmpi eq, %arg1, %c0_i32_30 : i32
    %46 = arith.extui %45 : i1 to i32
    %c0_i32_31 = arith.constant 0 : i32
    %47 = arith.cmpi ne, %46, %c0_i32_31 : i32
    scf.if %47 {
      %c0_32 = arith.constant 0 : index
      %c0_33 = arith.constant 0 : index
      %48 = vector.load %arg10[%c0_32, %c0_33] : memref<2x1xf32, #tpu.memory_space<vmem>>, vector<2x1xf32>
      %49 = tpu.reciprocal %48 {approx = true} : vector<2x1xf32> -> vector<2x1xf32>
      %50 = arith.mulf %48, %49 : vector<2x1xf32>
      %cst_34 = arith.constant 2.000000e+00 : f32
      %51 = vector.broadcast %cst_34 : f32 to vector<2x1xf32>
      %52 = arith.subf %51, %50 : vector<2x1xf32>
      %53 = arith.mulf %49, %52 : vector<2x1xf32>
      %c0_35 = arith.constant 0 : index
      %c0_36 = arith.constant 0 : index
      %54 = vector.load %arg11[%c0_35, %c0_36] : memref<2x32xf32, #tpu.memory_space<vmem>>, vector<2x32xf32>
      %55 = vector.broadcast %53 : vector<2x1xf32> to vector<2x32xf32>
      %56 = arith.mulf %54, %55 : vector<2x32xf32>
      %c0_37 = arith.constant 0 : index
      %c0_38 = arith.constant 0 : index
      %57 = vector.load %arg7[%c0_37, %c0_38] : memref<2x32xf32, #tpu.memory_space<vmem>>, vector<2x32xf32>
      tpu.vector_store %arg7[%c0_37, %c0_38], %56 {strides = array<i32>} : memref<2x32xf32, #tpu.memory_space<vmem>>, vector<2x32xf32>,
    } else {
    }
    return
  }
  func.func @transform_0(%arg0: i32, %arg1: i32) -> (i32, i32) {
    %c0_i32 = arith.constant 0 : i32
    %c0_i32_0 = arith.constant 0 : i32
    return %arg0, %c0_i32 : i32, i32
  }
  func.func @transform_1(%arg0: i32, %arg1: i32) -> (i32, i32, i32) {
    %c0_i32 = arith.constant 0 : i32
    %c0_i32_0 = arith.constant 0 : i32
    return %arg0, %arg1, %c0_i32 : i32, i32, i32
  }
  func.func @transform_2(%arg0: i32, %arg1: i32) -> (i32, i32) {
    %c0_i32 = arith.constant 0 : i32
    %c0_i32_0 = arith.constant 0 : i32
    %c0_i32_1 = arith.constant 0 : i32
    return %c0_i32, %c0_i32_0 : i32, i32
  }
  func.func @transform_3(%arg0: i32, %arg1: i32) -> (i32, i32) {
    %c0_i32 = arith.constant 0 : i32
    %c0_i32_0 = arith.constant 0 : i32
    %c0_i32_1 = arith.constant 0 : i32
    return %c0_i32, %c0_i32_0 : i32, i32
  }
  func.func @transform_4(%arg0: i32, %arg1: i32) -> (i32, i32) {
    %c0_i32 = arith.constant 0 : i32
    %c0_i32_0 = arith.constant 0 : i32
    %c0_i32_1 = arith.constant 0 : i32
    return %c0_i32, %c0_i32_0 : i32, i32
  }
  func.func @transform_5(%arg0: i32, %arg1: i32) -> (i32, i32) {
    %c0_i32 = arith.constant 0 : i32
    %c0_i32_0 = arith.constant 0 : i32
    return %arg0, %c0_i32 : i32, i32
  }
  func.func @transform_6(%arg0: i32, %arg1: i32) -> (i32, i32) {
    %c0_i32 = arith.constant 0 : i32
    return %arg0, %arg1 : i32, i32
  }
}

</mosaic_0001>

<llo_original>
// kernel: tpu_custom_call.1
$region0: #{tpu_custom_call.1}
  #allocation0 [shape = 'u32[]', space=smem, size = 0x4, offset = 0x4, fixed_abs, tag = 'smem constant byte address 0x4 - core index']
  #allocation1 [shape = 'u32[144,128]{1,0:T(1,128)}', space=vmem, size = 0x12000, scoped, tag = 'internal scratch']
  #allocation2 [shape = 'f32[2,1]{1,0:T(2,128)}', space=vmem, size = 0x400, scoped, tag = 'scratch operand']
  #allocation3 [shape = 'f32[2,1]{1,0:T(2,128)}', space=vmem, size = 0x400, scoped, tag = 'scratch operand']
  #allocation4 [shape = 'f32[2,32]{1,0:T(2,128)}', space=vmem, size = 0x400, scoped, tag = 'scratch operand']
  %s0 = inlined_call_operand.hbm [shape: f32[2,32], index: 0, kind: input, shape index: {}]
  %s1 = inlined_call_operand.hbm [shape: f32[2,8,32], index: 1, kind: input, shape index: {}]
  %s2 = inlined_call_operand.hbm [shape: f32[32,128], index: 2, kind: input, shape index: {}]
  %s3 = inlined_call_operand.hbm [shape: f32[32,128], index: 3, kind: input, shape index: {}]
  %s4 = inlined_call_operand.vmem [shape: f32[1,128], index: 4, kind: input, shape index: {}]
  %s5 = inlined_call_operand.hbm [shape: f32[2,32], index: 5, kind: output, shape index: {0}]
  %s6 = inlined_call_operand.hbm [shape: f32[2,8], index: 6, kind: output, shape index: {1}]
  %7 = xla_tuple %s5, %s6
  %s8 = sld [smem:[#allocation0]]
  $region62: #{tpu_custom_call.1} parent=0
    _
  %s10 = ssub.s32 1, %s8
  %s11 = scalar_select 0, %s10, %s8
  $region1: #{tpu_custom_call.1} parent=0
    #allocation5 [shape = 'u8[1024]{0}', space=vmem, size = 0x400, scoped, tag = 'input window, operand 0, single buffered']
    #allocation6 [shape = 's32[1]{0}', space=sflag, size = 0x4, scoped, tag = 'scoped memory for tpu_custom_call.1']
    #allocation7 [shape = 's32[1]{0}', space=sflag, size = 0x4, scoped, tag = 'scoped memory for tpu_custom_call.1']
    #allocation8 [shape = 'u8[8192]{0}', space=vmem, size = 0x2000, scoped, tag = 'input window, operand 1, single buffered']
    #allocation9 [shape = 's32[1]{0}', space=sflag, size = 0x4, scoped, tag = 'scoped memory for tpu_custom_call.1']
    #allocation10 [shape = 'u8[16384]{0}', space=vmem, size = 0x4000, scoped, tag = 'input window, operand 2, single buffered']
    #allocation11 [shape = 'u8[16384]{0}', space=vmem, size = 0x4000, scoped, tag = 'input window, operand 3, single buffered']
    #allocation12 [shape = 's32[1]{0}', space=sflag, size = 0x4, scoped, tag = 'scoped memory for tpu_custom_call.1']
    #allocation13 [shape = 'u8[1024]{0}', space=vmem, size = 0x400, scoped, tag = 'output window, operand 0, single buffered']
    #allocation14 [shape = 'u8[1024]{0}', space=vmem, size = 0x400, scoped, tag = 'output window, operand 1, single buffered']
    #allocation15 [shape = 's32[1]{0}', space=sflag, size = 0x4, scoped, tag = 'scoped memory for tpu_custom_call.1']
    %12 = vsyncpa [#allocation6], 0
    %13 = vsyncpa [#allocation9], 0
    %14 = vsyncpa [#allocation12], 0
    %15 = vsyncpa [#allocation7], 0
    %16 = vsyncpa [#allocation15], 0
    // Predicated region
    $region2: #{tpu_custom_call.1} parent=1 // pred_check
      _
    $region3: #{tpu_custom_call.1} parent=1 // pred_check_branch
      %18 = sbr.rel (0) target = $region5
    $region4: #{tpu_custom_call.1} parent=1 // pred_region
      %s20 = ssub.s32 32, 32
      %21 = vsyncadd [#allocation6], %s20
      %s23 = sshll.u32 [#allocation5], 4
      %s24 = int_to_ptr.vmem [resolvable:$true] %s23
      %26 = dma.hbm_to_vmem [thread:$0]  %s0, 32, %s24, [#allocation6]
    $region5: #{tpu_custom_call.1} parent=1 // pred_fallthru
      _
    // Predicated region
    $region6: #{tpu_custom_call.1} parent=1 // pred_check
      _
    $region7: #{tpu_custom_call.1} parent=1 // pred_check_branch
      %28 = sbr.rel (0) target = $region9
    $region8: #{tpu_custom_call.1} parent=1 // pred_region
      %s30 = ssub.s32 256, 256
      %31 = vsyncadd [#allocation9], %s30
      %s32 = sshll.u32 [#allocation8], 4
      %s33 = int_to_ptr.vmem [resolvable:$true] %s32
      %38 = dma.hbm_to_vmem [thread:$0]  %s1, 256, %s33, [#allocation9], 128, 128, 8
    $region9: #{tpu_custom_call.1} parent=1 // pred_fallthru
      _
    // Predicated region
    $region10: #{tpu_custom_call.1} parent=1 // pred_check
      _
    $region11: #{tpu_custom_call.1} parent=1 // pred_check_branch
      %40 = sbr.rel (0) target = $region13
    $region12: #{tpu_custom_call.1} parent=1 // pred_region
      %s42 = ssub.s32 512, 512
      %43 = vsyncadd [#allocation9], %s42
      %s44 = sshll.u32 [#allocation10], 4
      %s45 = int_to_ptr.vmem [resolvable:$true] %s44
      %50 = dma.hbm_to_vmem [thread:$0]  %s2, 512, %s45, [#allocation9], 128, 128, 8
    $region13: #{tpu_custom_call.1} parent=1 // pred_fallthru
      _
    // Predicated region
    $region14: #{tpu_custom_call.1} parent=1 // pred_check
      _
    $region15: #{tpu_custom_call.1} parent=1 // pred_check_branch
      %52 = sbr.rel (0) target = $region17
    $region16: #{tpu_custom_call.1} parent=1 // pred_region
      %s54 = ssub.s32 512, 512
      %55 = vsyncadd [#allocation12], %s54
      %s56 = sshll.u32 [#allocation11], 4
      %s57 = int_to_ptr.vmem [resolvable:$true] %s56
      %62 = dma.hbm_to_vmem [thread:$0]  %s3, 512, %s57, [#allocation12], 128, 128, 8
    $region17: #{tpu_custom_call.1} parent=1 // pred_fallthru
      _
    // Predicated region
    $region18: #{tpu_custom_call.1} parent=1 // pred_check
      _
    $region19: #{tpu_custom_call.1} parent=1 // pred_check_branch
      %64 = sbr.rel (0) target = $region21
    $region20: #{tpu_custom_call.1} parent=1 // pred_region
      _
    $region21: #{tpu_custom_call.1} parent=1 // pred_fallthru
      _
    // Predicated region
    $region22: #{tpu_custom_call.1} parent=1 // pred_check
      _
    $region23: #{tpu_custom_call.1} parent=1 // pred_check_branch
      %66 = sbr.rel (0) target = $region25
    $region24: #{tpu_custom_call.1} parent=1 // pred_region
      %67 = dma.done [#allocation6], 32
    $region25: #{tpu_custom_call.1} parent=1 // pred_fallthru
      _
    // Predicated region
    $region26: #{tpu_custom_call.1} parent=1 // pred_check
      _
    $region27: #{tpu_custom_call.1} parent=1 // pred_check_branch
      %69 = sbr.rel (0) target = $region29
    $region28: #{tpu_custom_call.1} parent=1 // pred_region
      %70 = dma.done [#allocation9], 256
    $region29: #{tpu_custom_call.1} parent=1 // pred_fallthru
      _
    // Predicated region
    $region30: #{tpu_custom_call.1} parent=1 // pred_check
      _
    $region31: #{tpu_custom_call.1} parent=1 // pred_check_branch
      %72 = sbr.rel (0) target = $region33
    $region32: #{tpu_custom_call.1} parent=1 // pred_region
      %73 = dma.done [#allocation9], 512
    $region33: #{tpu_custom_call.1} parent=1 // pred_fallthru
      _
    // Predicated region
    $region34: #{tpu_custom_call.1} parent=1 // pred_check
      _
    $region35: #{tpu_custom_call.1} parent=1 // pred_check_branch
      %75 = sbr.rel (0) target = $region37
    $region36: #{tpu_custom_call.1} parent=1 // pred_region
      %76 = dma.done [#allocation12], 512
    $region37: #{tpu_custom_call.1} parent=1 // pred_fallthru
      _
    %p77 = scmp.eq.s32.totalorder 0, 0
    // Predicated region
    $region38: #{tpu_custom_call.1} parent=1 // pred_check
      %p78 = pneg %p77
    $region39: #{tpu_custom_call.1} parent=1 // pred_check_branch
      %80 = sbr.rel (%p78) target = $region41
    $region40: #{tpu_custom_call.1} parent=1 // pred_region
      %vm81 = vcmask 1024
      %82 = vst.msk [vmem:[#allocation2] sm:$0x3] %vm81, -1e+30
      %83 = vst.msk [vmem:[#allocation3] sm:$0x3] %vm81, 0.0
      %vm84 = vcmask 254976
      %85 = vst.msk [vmem:[#allocation4] sm:$0x3] %vm84, 0.0
    $region41: #{tpu_custom_call.1} parent=1 // pred_fallthru
      _
    %v86 = vld [vmem:[#allocation5] sm:$0x3]
    %v87 = vld [vmem:[#allocation8] sm:$0xff]
    %v88 = vld [vmem:[#allocation8 + $0x8] sm:$0xff]
    %v89 = vld [vmem:[#allocation10] sm:$0xff]
    %v90 = vld [vmem:[#allocation10 + $0x8] sm:$0xff]
    %v91 = vld [vmem:[#allocation10 + $0x10] sm:$0xff]
    %v92 = vld [vmem:[#allocation10 + $0x18] sm:$0xff]
    %vm93 = vcmask 261120
    %v95 = vsel %vm93, %v86, 0
    %97 = vmatprep.subr.mxu0 0.0
    %98 = vmatpush1.msra.mxu0 %v89
    %99 = vmatprep.subr.mxu0 0.0
    %100 = vmatpush1.msra.mxu0 %v90
    %101 = vmatprep.subr.mxu0 0.0
    %102 = vmatpush1.msra.mxu0 %v91
    %103 = vmatprep.subr.mxu0 0.0
    %104 = vmatpush1.msra.mxu0 %v92
    %105 = vmatprep.subr.mxu0 0.0
    %106 = vmatpush1.msra.mxu0 0.0
    %107 = vmatprep.subr.mxu0 0.0
    %108 = vmatpush1.msra.mxu0 0.0
    %109 = vmatprep.subr.mxu0 0.0
    %110 = vmatpush1.msra.mxu0 0.0
    %111 = vmatprep.subr.mxu0 0.0
    %112 = vmatpush1.msra.mxu0 0.0
    %113 = vmatprep.subr.mxu0 0.0
    %114 = vmatpush1.msra.mxu0 0.0
    %115 = vmatprep.subr.mxu0 0.0
    %116 = vmatpush1.msra.mxu0 0.0
    %117 = vmatprep.subr.mxu0 0.0
    %118 = vmatpush1.msra.mxu0 0.0
    %119 = vmatprep.subr.mxu0 0.0
    %120 = vmatpush1.msra.mxu0 0.0
    %121 = vmatprep.subr.mxu0 0.0
    %122 = vmatpush1.msra.mxu0 0.0
    %123 = vmatprep.subr.mxu0 0.0
    %124 = vmatpush1.msra.mxu0 0.0
    %125 = vmatprep.subr.mxu0 0.0
    %126 = vmatpush1.msra.mxu0 0.0
    %127 = vmatprep.subr.mxu0 0.0
    %128 = vmatpush1.msra.mxu0 0.0
    %129 = vmatprep.subr.mxu0 0.0
    %130 = vmatpush1.msra.mxu0 0.0
    %131 = vmatprep.subr.mxu0 0.0
    %132 = vmatpush1.msra.mxu0 0.0
    %133 = vmatprep.subr.mxu0 0.0
    %134 = vmatpush1.msra.mxu0 0.0
    %135 = vmatprep.subr.mxu0 0.0
    %136 = vmatpush1.msra.mxu0 0.0
    %137 = vmatprep.subr.mxu0 0.0
    %138 = vmatpush1.msra.mxu0 0.0
    %139 = vmatprep.subr.mxu0 0.0
    %140 = vmatpush1.msra.mxu0 0.0
    %141 = vmatprep.subr.mxu0 0.0
    %142 = vmatpush1.msra.mxu0 0.0
    %143 = vmatprep.subr.mxu0 0.0
    %144 = vmatpush1.msra.mxu0 0.0
    %145 = vmatprep.subr.mxu0 0.0
    %146 = vmatpush1.msra.mxu0 0.0
    %147 = vmatprep.subr.mxu0 0.0
    %148 = vmatpush1.msra.mxu0 0.0
    %149 = vmatprep.subr.mxu0 0.0
    %150 = vmatpush1.msra.mxu0 0.0
    %151 = vmatprep.subr.mxu0 0.0
    %152 = vmatpush1.msra.mxu0 0.0
    %153 = vmatprep.subr.mxu0 0.0
    %154 = vmatpush1.msra.mxu0 0.0
    %155 = vmatprep.subr.mxu0 0.0
    %156 = vmatpush1.msra.mxu0 0.0
    %157 = vmatprep.subr.mxu0 0.0
    %158 = vmatpush1.msra.mxu0 0.0
    %159 = vmatprep.subr.mxu0 0.0
    %160 = vmatpush1.msra.mxu0 0.0
    %161 = vmatprep.mubr.f32.mxu0 0.0
    %162 = vmatmul.mubr.f32.gmra.mrb[0].mxu0 %v95
    %v163 = vpop.f32.mrb[0].mxu0
    %v164 = vadd.f32 0.0, %v163
    %v165 = vpop.f32.mrb[0].mxu0
    %166 = vdwg.mxu0
    %v167 = vld [vmem:[#allocation11] sm:$0xff]
    %v168 = vld [vmem:[#allocation11 + $0x8] sm:$0xff]
    %v169 = vld [vmem:[#allocation11 + $0x10] sm:$0xff]
    %v170 = vld [vmem:[#allocation11 + $0x18] sm:$0xff]
    %v172 = vsel %vm93, %v87, 0
    %v175 = vsel %vm93, %v88, 0
    %177 = vmatprep.subr.mxu0 0.0
    %178 = vmatpush1.msra.mxu0 %v167
    %179 = vmatprep.subr.mxu0 0.0
    %180 = vmatpush1.msra.mxu0 %v168
    %181 = vmatprep.subr.mxu0 0.0
    %182 = vmatpush1.msra.mxu0 %v169
    %183 = vmatprep.subr.mxu0 0.0
    %184 = vmatpush1.msra.mxu0 %v170
    %185 = vmatprep.subr.mxu0 0.0
    %186 = vmatpush1.msra.mxu0 0.0
    %187 = vmatprep.subr.mxu0 0.0
    %188 = vmatpush1.msra.mxu0 0.0
    %189 = vmatprep.subr.mxu0 0.0
    %190 = vmatpush1.msra.mxu0 0.0
    %191 = vmatprep.subr.mxu0 0.0
    %192 = vmatpush1.msra.mxu0 0.0
    %193 = vmatprep.subr.mxu0 0.0
    %194 = vmatpush1.msra.mxu0 0.0
    %195 = vmatprep.subr.mxu0 0.0
    %196 = vmatpush1.msra.mxu0 0.0
    %197 = vmatprep.subr.mxu0 0.0
    %198 = vmatpush1.msra.mxu0 0.0
    %199 = vmatprep.subr.mxu0 0.0
    %200 = vmatpush1.msra.mxu0 0.0
    %201 = vmatprep.subr.mxu0 0.0
    %202 = vmatpush1.msra.mxu0 0.0
    %203 = vmatprep.subr.mxu0 0.0
    %204 = vmatpush1.msra.mxu0 0.0
    %205 = vmatprep.subr.mxu0 0.0
    %206 = vmatpush1.msra.mxu0 0.0
    %207 = vmatprep.subr.mxu0 0.0
    %208 = vmatpush1.msra.mxu0 0.0
    %209 = vmatprep.subr.mxu0 0.0
    %210 = vmatpush1.msra.mxu0 0.0
    %211 = vmatprep.subr.mxu0 0.0
    %212 = vmatpush1.msra.mxu0 0.0
    %213 = vmatprep.subr.mxu0 0.0
    %214 = vmatpush1.msra.mxu0 0.0
    %215 = vmatprep.subr.mxu0 0.0
    %216 = vmatpush1.msra.mxu0 0.0
    %217 = vmatprep.subr.mxu0 0.0
    %218 = vmatpush1.msra.mxu0 0.0
    %219 = vmatprep.subr.mxu0 0.0
    %220 = vmatpush1.msra.mxu0 0.0
    %221 = vmatprep.subr.mxu0 0.0
    %222 = vmatpush1.msra.mxu0 0.0
    %223 = vmatprep.subr.mxu0 0.0
    %224 = vmatpush1.msra.mxu0 0.0
    %225 = vmatprep.subr.mxu0 0.0
    %226 = vmatpush1.msra.mxu0 0.0
    %227 = vmatprep.subr.mxu0 0.0
    %228 = vmatpush1.msra.mxu0 0.0
    %229 = vmatprep.subr.mxu0 0.0
    %230 = vmatpush1.msra.mxu0 0.0
    %231 = vmatprep.subr.mxu0 0.0
    %232 = vmatpush1.msra.mxu0 0.0
    %233 = vmatprep.subr.mxu0 0.0
    %234 = vmatpush1.msra.mxu0 0.0
    %235 = vmatprep.subr.mxu0 0.0
    %236 = vmatpush1.msra.mxu0 0.0
    %237 = vmatprep.subr.mxu0 0.0
    %238 = vmatpush1.msra.mxu0 0.0
    %239 = vmatprep.subr.mxu0 0.0
    %240 = vmatpush1.msra.mxu0 0.0
    %241 = vmatprep.mubr.f32.mxu0 0.0
    %242 = vmatmul.mubr.f32.gmra.mrb[0].mxu0 %v172
    %v243 = vpop.f32.mrb[0].mxu0
    %v244 = vadd.f32 0.0, %v243
    %v245 = vpop.f32.mrb[0].mxu0
    %246 = vmatprep.mubr.f32.mxu0 0.0
    %247 = vmatmul.mubr.f32.gmra.mrb[0].mxu0 %v175
    %v248 = vpop.f32.mrb[0].mxu0
    %v249 = vadd.f32 0.0, %v248
    %v250 = vpop.f32.mrb[0].mxu0
    %251 = vdwg.mxu0
    %v254 = vunpack.c.l.s4 1966171168
    %v255 = vunpack.c.0.s8 %v254
    %v256 = vlaneseq
    %v257 = vshrl.u32 %v256, 7
    %v258 = vsub.s32 %v255, %v257
    %v259 = vrot.slane %v164, %v258
    %v260 = vcombine.high %v259, %v259
    %v262 = vunpack.c.l.s4 1966171168
    %v263 = vunpack.c.0.s8 %v262
    %v264 = vlaneseq
    %v265 = vshrl.u32 %v264, 7
    %v266 = vsub.s32 %v263, %v265
    %v267 = vrot.slane %v259, %v266
    %v269 = vunpack.c.l.s4 1966171168
    %v270 = vunpack.c.0.s8 %v269
    %v271 = vlaneseq
    %v272 = vshrl.u32 %v271, 7
    %v273 = vsub.s32 %v270, %v272
    %v274 = vrot.slane %v260, %v273
    %v275 = vlaneseq
    %v276 = vshrl.u32 %v275, 7
    %v277 = vsub.s32 0, %v276
    %v278 = vrot.slane %v267, %v277
    %v279 = vlaneseq
    %v280 = vshrl.u32 %v279, 7
    %v281 = vsub.s32 0, %v280
    %v282 = vrot.slane %v274, %v281
    %v285 = vadd.f32 %v244, %v278
    %v286 = vadd.f32 %v249, %v282
    %v287 = vtanh.pop %v285
    %v288 = vtanh.pop %v286
    %v289 = vld [vmem:[%s4] sm:$0x1]
    %v291 = vlaneseq
    %v292 = vshrl.u32 %v291, 7
    %v293 = vsub.s32 0, %v292
    %v294 = vrot.slane %v289, %v293
    %v296 = vmul.f32 %v287, %v294
    %v297 = vmul.f32 %v288, %v294
    %298 = vadd.xlane.f32.xlu0 %v296
    %v299 = vpop.xlane.xlu0 %298
    %300 = vadd.xlane.f32.xlu0 %v297
    %v301 = vpop.xlane.xlu0 %300
    %v304 = vlaneseq
    %v305 = vand.u32 %v304, 127
    %v306 = vlaneseq
    %v307 = vshrl.u32 %v306, 7
    %v308 = vsub.s32 %v305, %v307
    %v309 = vrot.slane %v299, %v308
    %v310 = vlaneseq
    %v311 = vshrl.u32 %v310, 7
    %v312 = vsub.s32 %v305, %v311
    %v313 = vrot.slane %v301, %v312
    %vm314 = vcmask 1041409
    %v315 = vsel %vm314, %v313, %v309
    %vm317 = vcmask 58368
    %318 = vst.msk [vmem:[#allocation14] sm:$0x3] %vm317, %v315
    %v319 = vld [vmem:[#allocation2] sm:$0x3]
    %v320 = vsel %vm317, %v315, -inf
    %321 = vmax.xlane.f32.xlu0 %v320
    %v322 = vpop.xlane.xlu0 %321
    %v323 = vmax.f32 %v319, %v322
    %v324 = vsub.f32 %v319, %v323
    %v325 = vmul.f32 %v324, 1.442695
    %v326 = vpow.pop %v325
    %328 = vset.pattern.permute.xlu0 0
    %329 = vperm.xlu0 %328, %v323
    %v330 = vpop.permute.xlu0 %329
    %v331 = vlaneseq
    %v332 = vshrl.u32 %v331, 7
    %v333 = vsub.s32 0, %v332
    %v334 = vrot.slane %v330, %v333
    %v335 = vlaneseq
    %v336 = vshrl.u32 %v335, 7
    %v337 = vsub.s32 1, %v336
    %v338 = vrot.slane %v330, %v337
    %v341 = vsub.f32 %v299, %v334
    %v342 = vsub.f32 %v301, %v338
    %v343 = vmul.f32 %v341, 1.442695
    %v344 = vpow.pop %v343
    %v345 = vmul.f32 %v342, 1.442695
    %v346 = vpow.pop %v345
    %v347 = vld [vmem:[#allocation3] sm:$0x3]
    %v348 = vmul.f32 %v326, %v347
    %351 = vset.pattern.permute.xlu0 0
    %352 = vperm.xlu0 %351, %v344
    %v353 = vpop.permute.xlu0 %352
    %354 = vset.pattern.permute.xlu0 0
    %355 = vperm.xlu0 %354, %v346
    %v356 = vpop.permute.xlu0 %355
    %v357 = vlaneseq
    %v358 = vshrl.u32 %v357, 7
    %v359 = vsub.s32 %v305, %v358
    %v360 = vrot.slane %v353, %v359
    %v361 = vlaneseq
    %v362 = vshrl.u32 %v361, 7
    %v363 = vsub.s32 %v305, %v362
    %v364 = vrot.slane %v356, %v363
    %v365 = vsel %vm314, %v364, %v360
    %v367 = vsel %vm317, %v365, 0.0
    %368 = vadd.xlane.f32.xlu0 %v367
    %v369 = vpop.xlane.xlu0 %368
    %v370 = vadd.f32 %v348, %v369
    %vm371 = vcmask 1024
    %372 = vst.msk [vmem:[#allocation3] sm:$0x3] %vm371, %v370
    %vm373 = vcmask 64512
    %v374 = vsel %vm373, %v360, 0
    %376 = vmatprep.subr.mxu0 0.0
    %377 = vmatpush1.msra.mxu0 %v87
    %378 = vmatprep.subr.mxu0 0.0
    %379 = vmatpush1.msra.mxu0 0.0
    %380 = vmatprep.subr.mxu0 0.0
    %381 = vmatpush1.msra.mxu0 0.0
    %382 = vmatprep.subr.mxu0 0.0
    %383 = vmatpush1.msra.mxu0 0.0
    %384 = vmatprep.subr.mxu0 0.0
    %385 = vmatpush1.msra.mxu0 0.0
    %386 = vmatprep.subr.mxu0 0.0
    %387 = vmatpush1.msra.mxu0 0.0
    %388 = vmatprep.subr.mxu0 0.0
    %389 = vmatpush1.msra.mxu0 0.0
    %390 = vmatprep.subr.mxu0 0.0
    %391 = vmatpush1.msra.mxu0 0.0
    %392 = vmatprep.subr.mxu0 0.0
    %393 = vmatpush1.msra.mxu0 0.0
    %394 = vmatprep.subr.mxu0 0.0
    %395 = vmatpush1.msra.mxu0 0.0
    %396 = vmatprep.subr.mxu0 0.0
    %397 = vmatpush1.msra.mxu0 0.0
    %398 = vmatprep.subr.mxu0 0.0
    %399 = vmatpush1.msra.mxu0 0.0
    %400 = vmatprep.subr.mxu0 0.0
    %401 = vmatpush1.msra.mxu0 0.0
    %402 = vmatprep.subr.mxu0 0.0
    %403 = vmatpush1.msra.mxu0 0.0
    %404 = vmatprep.subr.mxu0 0.0
    %405 = vmatpush1.msra.mxu0 0.0
    %406 = vmatprep.subr.mxu0 0.0
    %407 = vmatpush1.msra.mxu0 0.0
    %408 = vmatprep.subr.mxu0 0.0
    %409 = vmatpush1.msra.mxu0 0.0
    %410 = vmatprep.subr.mxu0 0.0
    %411 = vmatpush1.msra.mxu0 0.0
    %412 = vmatprep.subr.mxu0 0.0
    %413 = vmatpush1.msra.mxu0 0.0
    %414 = vmatprep.subr.mxu0 0.0
    %415 = vmatpush1.msra.mxu0 0.0
    %416 = vmatprep.subr.mxu0 0.0
    %417 = vmatpush1.msra.mxu0 0.0
    %418 = vmatprep.subr.mxu0 0.0
    %419 = vmatpush1.msra.mxu0 0.0
    %420 = vmatprep.subr.mxu0 0.0
    %421 = vmatpush1.msra.mxu0 0.0
    %422 = vmatprep.subr.mxu0 0.0
    %423 = vmatpush1.msra.mxu0 0.0
    %424 = vmatprep.subr.mxu0 0.0
    %425 = vmatpush1.msra.mxu0 0.0
    %426 = vmatprep.subr.mxu0 0.0
    %427 = vmatpush1.msra.mxu0 0.0
    %428 = vmatprep.subr.mxu0 0.0
    %429 = vmatpush1.msra.mxu0 0.0
    %430 = vmatprep.subr.mxu0 0.0
    %431 = vmatpush1.msra.mxu0 0.0
    %432 = vmatprep.subr.mxu0 0.0
    %433 = vmatpush1.msra.mxu0 0.0
    %434 = vmatprep.subr.mxu0 0.0
    %435 = vmatpush1.msra.mxu0 0.0
    %436 = vmatprep.subr.mxu0 0.0
    %437 = vmatpush1.msra.mxu0 0.0
    %438 = vmatprep.subr.mxu0 0.0
    %439 = vmatpush1.msra.mxu0 0.0
    %440 = vmatprep.mubr.f32.mxu0 0.0
    %441 = vmatmul.mubr.f32.gmra.mrb[0].mxu0 %v374
    %v442 = vpop.f32.mrb[0].mxu0
    %v443 = vadd.f32 0.0, %v442
    %v444 = vpop.f32.mrb[0].mxu0
    %445 = vdwg.mxu0
    %v446 = vsel %vm373, %v364, 0
    %448 = vmatprep.subr.mxu0 0.0
    %449 = vmatpush1.msra.mxu0 %v88
    %450 = vmatprep.subr.mxu0 0.0
    %451 = vmatpush1.msra.mxu0 0.0
    %452 = vmatprep.subr.mxu0 0.0
    %453 = vmatpush1.msra.mxu0 0.0
    %454 = vmatprep.subr.mxu0 0.0
    %455 = vmatpush1.msra.mxu0 0.0
    %456 = vmatprep.subr.mxu0 0.0
    %457 = vmatpush1.msra.mxu0 0.0
    %458 = vmatprep.subr.mxu0 0.0
    %459 = vmatpush1.msra.mxu0 0.0
    %460 = vmatprep.subr.mxu0 0.0
    %461 = vmatpush1.msra.mxu0 0.0
    %462 = vmatprep.subr.mxu0 0.0
    %463 = vmatpush1.msra.mxu0 0.0
    %464 = vmatprep.subr.mxu0 0.0
    %465 = vmatpush1.msra.mxu0 0.0
    %466 = vmatprep.subr.mxu0 0.0
    %467 = vmatpush1.msra.mxu0 0.0
    %468 = vmatprep.subr.mxu0 0.0
    %469 = vmatpush1.msra.mxu0 0.0
    %470 = vmatprep.subr.mxu0 0.0
    %471 = vmatpush1.msra.mxu0 0.0
    %472 = vmatprep.subr.mxu0 0.0
    %473 = vmatpush1.msra.mxu0 0.0
    %474 = vmatprep.subr.mxu0 0.0
    %475 = vmatpush1.msra.mxu0 0.0
    %476 = vmatprep.subr.mxu0 0.0
    %477 = vmatpush1.msra.mxu0 0.0
    %478 = vmatprep.subr.mxu0 0.0
    %479 = vmatpush1.msra.mxu0 0.0
    %480 = vmatprep.subr.mxu0 0.0
    %481 = vmatpush1.msra.mxu0 0.0
    %482 = vmatprep.subr.mxu0 0.0
    %483 = vmatpush1.msra.mxu0 0.0
    %484 = vmatprep.subr.mxu0 0.0
    %485 = vmatpush1.msra.mxu0 0.0
    %486 = vmatprep.subr.mxu0 0.0
    %487 = vmatpush1.msra.mxu0 0.0
    %488 = vmatprep.subr.mxu0 0.0
    %489 = vmatpush1.msra.mxu0 0.0
    %490 = vmatprep.subr.mxu0 0.0
    %491 = vmatpush1.msra.mxu0 0.0
    %492 = vmatprep.subr.mxu0 0.0
    %493 = vmatpush1.msra.mxu0 0.0
    %494 = vmatprep.subr.mxu0 0.0
    %495 = vmatpush1.msra.mxu0 0.0
    %496 = vmatprep.subr.mxu0 0.0
    %497 = vmatpush1.msra.mxu0 0.0
    %498 = vmatprep.subr.mxu0 0.0
    %499 = vmatpush1.msra.mxu0 0.0
    %500 = vmatprep.subr.mxu0 0.0
    %501 = vmatpush1.msra.mxu0 0.0
    %502 = vmatprep.subr.mxu0 0.0
    %503 = vmatpush1.msra.mxu0 0.0
    %504 = vmatprep.subr.mxu0 0.0
    %505 = vmatpush1.msra.mxu0 0.0
    %506 = vmatprep.subr.mxu0 0.0
    %507 = vmatpush1.msra.mxu0 0.0
    %508 = vmatprep.subr.mxu0 0.0
    %509 = vmatpush1.msra.mxu0 0.0
    %510 = vmatprep.subr.mxu0 0.0
    %511 = vmatpush1.msra.mxu0 0.0
    %512 = vmatprep.mubr.f32.mxu0 0.0
    %513 = vmatmul.mubr.f32.gmra.mrb[0].mxu0 %v446
    %v514 = vpop.f32.mrb[0].mxu0
    %v515 = vadd.f32 0.0, %v514
    %v516 = vpop.f32.mrb[0].mxu0
    %517 = vdwg.mxu0
    %v518 = vld [vmem:[#allocation4] sm:$0x3]
    %520 = vset.pattern.permute.xlu0 0
    %521 = vperm.xlu0 %520, %v326
    %v522 = vpop.permute.xlu0 %521
    %v524 = vmul.f32 %v522, %v518
    %v527 = vrot.slane %v515, 7
    %v528 = vsel %vm314, %v527, %v443
    %v530 = vadd.f32 %v524, %v528
    %vm531 = vcmask 254976
    %532 = vst.msk [vmem:[#allocation4] sm:$0x3] %vm531, %v530
    %533 = vst.msk [vmem:[#allocation2] sm:$0x3] %vm371, %v323
    // Predicated region
    $region42: #{tpu_custom_call.1} parent=1 // pred_check
      %p534 = pneg %p77
    $region43: #{tpu_custom_call.1} parent=1 // pred_check_branch
      %536 = sbr.rel (%p534) target = $region45
    $region44: #{tpu_custom_call.1} parent=1 // pred_region
      %v537 = vld [vmem:[#allocation3] sm:$0x3]
      %v538 = vrcp.pop %v537
      %v539 = vmul.f32 %v537, %v538
      %v540 = vsub.f32 2.0, %v539
      %v541 = vmul.f32 %v538, %v540
      %v542 = vld [vmem:[#allocation4] sm:$0x3]
      %544 = vset.pattern.permute.xlu0 0
      %545 = vperm.xlu0 %544, %v541
      %v546 = vpop.permute.xlu0 %545
      %v548 = vmul.f32 %v542, %v546
      %549 = vst.msk [vmem:[#allocation13] sm:$0x3] %vm531, %v548
    $region45: #{tpu_custom_call.1} parent=1 // pred_fallthru
      _
    // Predicated region
    $region46: #{tpu_custom_call.1} parent=1 // pred_check
      _
    $region47: #{tpu_custom_call.1} parent=1 // pred_check_branch
      %551 = sbr.rel (0) target = $region49
    $region48: #{tpu_custom_call.1} parent=1 // pred_region
      %s553 = ssub.s32 32, 32
      %554 = vsyncadd [#allocation7], %s553
      %s556 = sshll.u32 [#allocation13], 4
      %s557 = int_to_ptr.vmem [resolvable:$true] %s556
      %559 = dma.vmem_to_hbm [thread:$0]  %s557, 32, %s5, [#allocation7]
    $region49: #{tpu_custom_call.1} parent=1 // pred_fallthru
      _
    // Predicated region
    $region50: #{tpu_custom_call.1} parent=1 // pred_check
      _
    $region51: #{tpu_custom_call.1} parent=1 // pred_check_branch
      %561 = sbr.rel (0) target = $region53
    $region52: #{tpu_custom_call.1} parent=1 // pred_region
      %s563 = ssub.s32 32, 32
      %564 = vsyncadd [#allocation15], %s563
      %s566 = sshll.u32 [#allocation14], 4
      %s567 = int_to_ptr.vmem [resolvable:$true] %s566
      %569 = dma.vmem_to_hbm [thread:$0]  %s567, 32, %s6, [#allocation15]
    $region53: #{tpu_custom_call.1} parent=1 // pred_fallthru
      _
    // Predicated region
    $region54: #{tpu_custom_call.1} parent=1 // pred_check
      _
    $region55: #{tpu_custom_call.1} parent=1 // pred_check_branch
      %571 = sbr.rel (0) target = $region57
    $region56: #{tpu_custom_call.1} parent=1 // pred_region
      %572 = dma.done [#allocation7], 32
    $region57: #{tpu_custom_call.1} parent=1 // pred_fallthru
      _
    // Predicated region
    $region58: #{tpu_custom_call.1} parent=1 // pred_check
      _
    $region59: #{tpu_custom_call.1} parent=1 // pred_check_branch
      %574 = sbr.rel (0) target = $region61
    $region60: #{tpu_custom_call.1} parent=1 // pred_region
      %575 = dma.done [#allocation15], 32
    $region61: #{tpu_custom_call.1} parent=1 // pred_fallthru
      _
    %576 = vsyncpa [#allocation6], 1
    %577 = vsyncpa [#allocation9], 1
    %578 = vsyncpa [#allocation12], 1
    %579 = vsyncpa [#allocation7], 1
    %580 = vsyncpa [#allocation15], 1

</llo_original>
